<compile_context>
chip_gen: v5e
topology: v5e:2x2
jax: 0.10.0
libtpu: 0.0.40
codegen_flags: <defaults>
</compile_context>

<pallas_src>
import functools

import jax
import jax.numpy as jnp
from jax.experimental import pallas as pl
from jax.experimental.pallas import tpu as pltpu


# ----------------------------- Pallas kernel --------------------------------
def attention_pool_kernel(n_real,                # static: un-padded tile count
                          lens_ref,              # (bb, 1)  int32
                          x_ref,                 # (bb, Np, E)   matmul dtype
                          w1_ref, b1_ref,        # (E, H1) mm-dtype, (1, H1) f32
                          w2_ref, b2_ref,        # (H1, H2) mm-dtype, (1, H2) f32
                          watt_ref,              # (1, H2)  f32
                          att_ref,               # (bb, Np)  f32  out
                          atth_ref):             # (bb, H2)  f32  out
    bb, n, e = x_ref.shape
    h2 = w2_ref.shape[1]

    # Fold all bb*n tiles into one matmul slab (raises MXU M-dim utilization).
    # n is a sublane multiple (wrapper guarantee) so this reshape is free.
    x = x_ref[...].reshape(bb * n, e)

    # encoder: Dropout(id) -> Linear -> ReLU -> Dropout(id) -> Linear -> Tanh
    # Matmul operands in matmul dtype (bf16 on v6e/v7x), f32 accumulation;
    # bias / ReLU / tanh stay f32.
    h1 = jnp.dot(x, w1_ref[...], preferred_element_type=jnp.float32) + b1_ref[...]
    h1 = jnp.maximum(h1, 0.0)                                        # (bb*n, H1) f32
    h = jnp.tanh(
        jnp.dot(h1.astype(w2_ref.dtype), w2_ref[...],
                preferred_element_type=jnp.float32) + b2_ref[...]
    )                                                                # (bb*n, H2) f32

    h3 = h.reshape(bb, n, h2)                                        # (bb, n, H2)

    # attention logits on VPU/XLU: sum_h h[b,n,h] * watt[h] -> (bb, n)
    s = jnp.sum(h3 * watt_ref[...], axis=-1)

    idx = jax.lax.broadcasted_iota(jnp.int32, (bb, n), 1)
    if n_real < n:
        # Padded tile columns must NOT participate in the softmax (they do not
        # exist in the un-padded reference).  Static branch: free when n==n_real.
        s = jnp.where(idx < n_real, s, -jnp.inf)

    # per-bag softmax over the tiles
    m = jnp.max(s, axis=-1, keepdims=True)
    ex = jnp.exp(s - m)
    att = ex / jnp.sum(ex, axis=-1, keepdims=True)                   # (bb, n)

    # mask AFTER softmax (matches the PyTorch module; no renormalization).
    # NOTE: tiles with idx >= bag_lens (but < n_real) still take part in the
    # softmax max/denominator — faithful to the reference; the caller must
    # keep those rows of x finite.
    lens = lens_ref[...]                                             # (bb, 1)
    att = att * (idx < lens).astype(att.dtype)                       # (bb, n)

    # attention-weighted pooling on the MXU, no (bb, n, H2) broadcast temp:
    pooled = jnp.einsum('bqn,bnh->bqh', att[:, None, :], h3,
                        preferred_element_type=jnp.float32)[:, 0, :]  # (bb, H2)

    # sublane-dense stores: bags on sublanes, n / H2 on lanes.
    att_ref[...] = att
    atth_ref[...] = pooled


# ------------------------------- wrapper -------------------------------------
def _device_kind():
    try:
        return jax.devices()[0].device_kind.lower()
    except Exception:  # pragma: no cover - CPU / interpret fallback
        return ""


def attention_pool(x, bag_lens, params, *, block_bags=8,
                   matmul_dtype=jnp.bfloat16):
    """x: (B, N, E); bag_lens: (B,) int.

    Returns (output (B, OUT), att_r (B, N), att_H (B, 1, H2)),
    matching the PyTorch forward's return tuple.
    """
    B, N, E = x.shape
    w1, b1, w2, b2, watt, wout = (params[k] for k in
                                  ("w1", "b1", "w2", "b2", "watt", "wout"))
    H1 = w1.shape[1]
    H2 = w2.shape[1]

    in_bytes = jnp.dtype(matmul_dtype).itemsize
    sub = 16 if in_bytes == 2 else 8                 # sublane packing of x
    N_pad = ((N + sub - 1) // sub) * sub             # keep in-kernel reshape free

    is_v7x = "v7" in _device_kind()

    # ---- bags per grid step ----------------------------------------------
    bb = max(1, min(block_bags, B))
    # VMEM budget clamp: double-buffered x block + f32 in-kernel temps per bag.
    per_bag = N_pad * (2 * E * in_bytes + (H1 + 3 * H2 + 2) * 4) + 8 * (N_pad + H2)
    budget = 24 * (1 << 20)
    bb = max(1, min(bb, budget // max(per_bag, 1)))
    # v7x only: split the grid across the two TensorCores, but only when each
    # step still feeds the MXU a non-degenerate slab (>= 256 rows).
    if is_v7x and B >= 2 and bb >= B:
        half = (B + 1) // 2
        if half * N_pad >= 256:
            bb = half
    # BlockSpec legality: the 2-D outputs put bags on sublanes, so a tiled bag
    # axis needs bb % 8 == 0 (or bb == full extent -> single grid step).
    if bb >= B:
        bb, B_pad = B, B
    else:
        bb = max(8, (bb // 8) * 8)
        if bb >= B:
            bb, B_pad = B, B
        else:
            B_pad = ((B + bb - 1) // bb) * bb
    G = B_pad // bb

    # ---- operands (no E padding; skip the bag/N pad copy when unneeded) ----
    if (B_pad, N_pad) == (B, N):
        xk = x.astype(matmul_dtype)
        lens2d = bag_lens.astype(jnp.int32).reshape(B, 1)
    else:
        xk = jnp.zeros((B_pad, N_pad, E), matmul_dtype).at[:B, :N, :].set(
            x.astype(matmul_dtype))
        lens2d = jnp.zeros((B_pad, 1), jnp.int32).at[:B, 0].set(
            bag_lens.astype(jnp.int32))
    w1k = w1.astype(matmul_dtype)
    w2k = w2.astype(matmul_dtype)
    b1r = b1.reshape(1, H1).astype(jnp.float32)
    b2r = b2.reshape(1, H2).astype(jnp.float32)
    watt_row = watt.reshape(1, H2).astype(jnp.float32)

    out_shapes = (
        jax.ShapeDtypeStruct((B_pad, N_pad), jnp.float32),   # att  (bags on sublanes)
        jax.ShapeDtypeStruct((B_pad, H2), jnp.float32),      # att_H
    )

    grid_spec = pltpu.PrefetchScalarGridSpec(
        num_scalar_prefetch=0,
        grid=(G,),
        in_specs=[
            pl.BlockSpec((bb, 1),        lambda i: (i, 0)),    # bag lens
            pl.BlockSpec((bb, N_pad, E), lambda i: (i, 0, 0)), # x tile
            pl.BlockSpec((E, H1),        lambda i: (0, 0)),    # weights: constant
            pl.BlockSpec((1, H1),        lambda i: (0, 0)),    #   index maps ->
            pl.BlockSpec((H1, H2),       lambda i: (0, 0)),    #   VMEM-resident
            pl.BlockSpec((1, H2),        lambda i: (0, 0)),
            pl.BlockSpec((1, H2),        lambda i: (0, 0)),
        ],
        out_specs=[
            pl.BlockSpec((bb, N_pad), lambda i: (i, 0)),
            pl.BlockSpec((bb, H2),    lambda i: (i, 0)),
        ],
    )

    # Explicit VMEM ceiling (v7x default scoped limit is tighter than v5e/v6e).
    vmem_need = (2 * bb * N_pad * E * in_bytes
                 + 2 * bb * (N_pad + H2) * 4
                 + 2 * ((E * H1 + H1 * H2) * in_bytes + (H1 + 2 * H2) * 4)
                 + bb * N_pad * (H1 + 2 * H2 + 2) * 4
                 + (1 << 20))
    vmem_limit = int(min(48 * (1 << 20), max(16 * (1 << 20), 2 * vmem_need)))

    cost = pl.CostEstimate(
        flops=2 * B_pad * N_pad * (E * H1 + H1 * H2 + H2) + 8 * B_pad * N_pad,
        transcendentals=B_pad * N_pad * (H2 + 1),
        bytes_accessed=(B_pad * N_pad * E * in_bytes
                        + (E * H1 + H1 * H2) * in_bytes
                        + (H1 + 2 * H2) * 4
                        + B_pad * (N_pad + H2 + 1) * 4),
    )

    att2, atth2 = pl.pallas_call(
        functools.partial(attention_pool_kernel, N),
        out_shape=out_shapes,
        grid_spec=grid_spec,
        compiler_params=pltpu.CompilerParams(
            dimension_semantics=("parallel",),
            vmem_limit_bytes=vmem_limit),
        cost_estimate=cost,
    )(lens2d, xk, w1k, b1r, w2k, b2r, watt_row)

    att_r = att2[:B, :N]                                   # (B, N)
    att_H = atth2[:B][:, None, :]                          # (B, 1, H2)
    # Tiny bias-free output projection stays outside the kernel (a (·,128)@(128,8)
    # op with an 8/128-lane masked store per grid step would be pure overhead).
    output = atth2[:B] @ wout.astype(jnp.float32)          # (B, OUT)
    return output, att_r, att_H


# --------------------------- pure-JAX reference -------------------------------
def attention_pool_ref(x, bag_lens, params):
    w1, b1, w2, b2, watt, wout = (params[k] for k in
                                  ("w1", "b1", "w2", "b2", "watt", "wout"))
    h1 = jax.nn.relu(x @ w1 + b1)
    h = jnp.tanh(h1 @ w2 + b2)
    s = h @ watt                                             # (B, N, 1)
    att = jax.nn.softmax(jnp.swapaxes(s, -2, -1), axis=-1)   # (B, 1, N)
    N = x.shape[1]
    mask = (jnp.arange(N)[None, None, :] < bag_lens[:, None, None]).astype(att.dtype)
    att = att * mask
    att_h = att @ h                                          # (B, 1, H2)
    out = (att_h @ wout)[:, 0, :]                            # (B, OUT)
    return out, att[:, 0, :], att_h


# ------------------------------- main -----------------------------------------
if __name__ == "__main__":
    # Module hyperparameters (att_layer_width = [256, 128] fixed in __init__).
    EMBED_DIM = 32
    OUTPUT_DIM = 8
    H1, H2 = 256, 128
    B, N = 2, 16

    key = jax.random.PRNGKey(0)
    k = jax.random.split(key, 8)

    params = {
        "w1":   0.1 * jax.random.normal(k[0], (EMBED_DIM, H1), jnp.float32),
        "b1":   0.1 * jax.random.normal(k[1], (1, H1), jnp.float32),
        "w2":   0.1 * jax.random.normal(k[2], (H1, H2), jnp.float32),
        "b2":   0.1 * jax.random.normal(k[3], (1, H2), jnp.float32),
        "watt": 0.1 * jax.random.normal(k[4], (H2, 1), jnp.float32),
        "wout": 0.1 * jax.random.normal(k[5], (H2, OUTPUT_DIM), jnp.float32),
    }

    x = jax.random.normal(k[6], (B, N, EMBED_DIM), jnp.float32)
    bag_lens = jnp.array([16, 10], dtype=jnp.int32)

    ref_out, ref_att_r, ref_att_h = attention_pool_ref(x, bag_lens, params)

    # Exact-f32 path: matches the f32 reference tightly.
    out, att_r, att_h = attention_pool(x, bag_lens, params,
                                       matmul_dtype=jnp.float32)
    jax.block_until_ready((out, att_r, att_h))
    assert out.shape == (B, OUTPUT_DIM)
    assert att_r.shape == (B, N)
    assert att_h.shape == (B, 1, H2)
    assert jnp.allclose(out, ref_out, atol=2e-5, rtol=2e-5)
    assert jnp.allclose(att_r, ref_att_r, atol=2e-5, rtol=2e-5)
    assert jnp.allclose(att_h, ref_att_h, atol=2e-5, rtol=2e-5)

    # Default perf path: bf16 matmul operands (v6e/v7x MXU-native), f32
    # accumulation and activations; looser tolerance per the review.
    out16, att_r16, att_h16 = attention_pool(x, bag_lens, params)
    jax.block_until_ready((out16, att_r16, att_h16))
    assert jnp.allclose(out16, ref_out, atol=5e-2, rtol=5e-2)
    assert jnp.allclose(att_r16, ref_att_r, atol=5e-2, rtol=5e-2)
    assert jnp.allclose(att_h16, ref_att_h, atol=5e-2, rtol=5e-2)

    print("KERNEL_OK")
</pallas_src>

<mosaic_0001>
module attributes {stable_mosaic.version = 11 : i64} {
  func.func @attention_pool_kernel(%arg0: i32, %arg1: memref<2x1xi32, #tpu.memory_space<vmem>>, %arg2: memref<2x16x32xf32, #tpu.memory_space<vmem>>, %arg3: memref<32x256xf32, #tpu.memory_space<vmem>>, %arg4: memref<1x256xf32, #tpu.memory_space<vmem>>, %arg5: memref<256x128xf32, #tpu.memory_space<vmem>>, %arg6: memref<1x128xf32, #tpu.memory_space<vmem>>, %arg7: memref<1x128xf32, #tpu.memory_space<vmem>>, %arg8: memref<2x16xf32, #tpu.memory_space<vmem>>, %arg9: memref<2x128xf32, #tpu.memory_space<vmem>>) attributes {dimension_semantics = [#tpu.dimension_semantics<parallel>], iteration_bounds = array<i64: 1>, scalar_prefetch = 0 : i64, scratch_operands = 0 : i64, tpu.core_type = #tpu.core_type<tc>, window_params = [{transform_indices = @transform_0, window_bounds = array<i64: 2, 1>}, {transform_indices = @transform_1, window_bounds = array<i64: 2, 16, 32>}, {pipeline_mode = #tpu.pipeline_mode<synchronous>, transform_indices = @transform_2, window_bounds = array<i64: 32, 256>}, {pipeline_mode = #tpu.pipeline_mode<synchronous>, transform_indices = @transform_3, window_bounds = array<i64: 1, 256>}, {pipeline_mode = #tpu.pipeline_mode<synchronous>, transform_indices = @transform_4, window_bounds = array<i64: 256, 128>}, {pipeline_mode = #tpu.pipeline_mode<synchronous>, transform_indices = @transform_5, window_bounds = array<i64: 1, 128>}, {pipeline_mode = #tpu.pipeline_mode<synchronous>, transform_indices = @transform_6, window_bounds = array<i64: 1, 128>}, {transform_indices = @transform_7, window_bounds = array<i64: 2, 16>}, {transform_indices = @transform_8, window_bounds = array<i64: 2, 128>}]} {
    %c0 = arith.constant 0 : index
    %c0_0 = arith.constant 0 : index
    %c0_1 = arith.constant 0 : index
    %0 = vector.load %arg2[%c0, %c0_0, %c0_1] : memref<2x16x32xf32, #tpu.memory_space<vmem>>, vector<2x16x32xf32>
    %1 = vector.shape_cast %0 : vector<2x16x32xf32> to vector<32x32xf32>
    %c0_2 = arith.constant 0 : index
    %c0_3 = arith.constant 0 : index
    %2 = vector.load %arg3[%c0_2, %c0_3] : memref<32x256xf32, #tpu.memory_space<vmem>>, vector<32x256xf32>
    %cst = arith.constant dense<0.000000e+00> : vector<32x256xf32>
    %3 = tpu.matmul %1, %2, %cst {dimension_numbers = #tpu.dot_dimension_numbers<[1], [0], [0], [1], [0, 0, 1, 1], [], []>} : vector<32x32xf32>, vector<32x256xf32>, vector<32x256xf32> -> vector<32x256xf32>
    %c0_4 = arith.constant 0 : index
    %c0_5 = arith.constant 0 : index
    %4 = vector.load %arg4[%c0_4, %c0_5] : memref<1x256xf32, #tpu.memory_space<vmem>>, vector<1x256xf32>
    %5 = vector.broadcast %4 : vector<1x256xf32> to vector<32x256xf32>
    %6 = arith.addf %3, %5 : vector<32x256xf32>
    %cst_6 = arith.constant 0.000000e+00 : f32
    %7 = vector.broadcast %cst_6 : f32 to vector<32x256xf32>
    %8 = arith.maximumf %6, %7 : vector<32x256xf32>
    %c0_7 = arith.constant 0 : index
    %c0_8 = arith.constant 0 : index
    %9 = vector.load %arg5[%c0_7, %c0_8] : memref<256x128xf32, #tpu.memory_space<vmem>>, vector<256x128xf32>
    %cst_9 = arith.constant dense<0.000000e+00> : vector<32x128xf32>
    %10 = tpu.matmul %8, %9, %cst_9 {dimension_numbers = #tpu.dot_dimension_numbers<[1], [0], [0], [1], [0, 0, 1, 1], [], []>} : vector<32x256xf32>, vector<256x128xf32>, vector<32x128xf32> -> vector<32x128xf32>
    %c0_10 = arith.constant 0 : index
    %c0_11 = arith.constant 0 : index
    %11 = vector.load %arg6[%c0_10, %c0_11] : memref<1x128xf32, #tpu.memory_space<vmem>>, vector<1x128xf32>
    %12 = vector.broadcast %11 : vector<1x128xf32> to vector<32x128xf32>
    %13 = arith.addf %10, %12 : vector<32x128xf32>
    %14 = math.tanh %13 : vector<32x128xf32>
    %15 = vector.shape_cast %14 : vector<32x128xf32> to vector<2x16x128xf32>
    %c0_12 = arith.constant 0 : index
    %c0_13 = arith.constant 0 : index
    %16 = vector.load %arg7[%c0_12, %c0_13] : memref<1x128xf32, #tpu.memory_space<vmem>>, vector<1x128xf32>
    %17 = vector.shape_cast %16 : vector<1x128xf32> to vector<1x1x128xf32>
    %18 = vector.broadcast %17 : vector<1x1x128xf32> to vector<2x16x128xf32>
    %19 = arith.mulf %15, %18 : vector<2x16x128xf32>
    %cst_14 = arith.constant dense<0.000000e+00> : vector<2x16xf32>
    %20 = vector.multi_reduction <add>, %19, %cst_14 [2] : vector<2x16x128xf32> to vector<2x16xf32>
    %21 = tpu.iota {dimensions = array<i32: 1>} : vector<2x16xi32>
    %cst_15 = arith.constant dense<0xFF800000> : vector<2xf32>
    %22 = vector.multi_reduction <maximumf>, %20, %cst_15 [1] : vector<2x16xf32> to vector<2xf32>
    %23 = vector.shape_cast %22 : vector<2xf32> to vector<2x1xf32>
    %24 = vector.broadcast %23 : vector<2x1xf32> to vector<2x16xf32>
    %25 = arith.subf %20, %24 : vector<2x16xf32>
    %26 = math.exp %25 : vector<2x16xf32>
    %cst_16 = arith.constant dense<0.000000e+00> : vector<2xf32>
    %27 = vector.multi_reduction <add>, %26, %cst_16 [1] : vector<2x16xf32> to vector<2xf32>
    %28 = vector.shape_cast %27 : vector<2xf32> to vector<2x1xf32>
    %29 = vector.broadcast %28 : vector<2x1xf32> to vector<2x16xf32>
    %30 = arith.divf %26, %29 : vector<2x16xf32>
    %c0_17 = arith.constant 0 : index
    %c0_18 = arith.constant 0 : index
    %31 = vector.load %arg1[%c0_17, %c0_18] : memref<2x1xi32, #tpu.memory_space<vmem>>, vector<2x1xi32>
    %32 = vector.broadcast %31 : vector<2x1xi32> to vector<2x16xi32>
    %33 = arith.cmpi slt, %21, %32 : vector<2x16xi32>
    %34 = arith.extui %33 : vector<2x16xi1> to vector<2x16xi32>
    %35 = arith.sitofp %34 : vector<2x16xi32> to vector<2x16xf32>
    %36 = arith.mulf %30, %35 : vector<2x16xf32>
    %37 = vector.shape_cast %36 : vector<2x16xf32> to vector<2x1x16xf32>
    "tpu.trace_start"() <{level = 10 : i32, message = "bqn,bnh->bqh"}> : () -> ()
    %cst_19 = arith.constant dense<0.000000e+00> : vector<2x1x128xf32>
    %38 = tpu.matmul %37, %15, %cst_19 {dimension_numbers = #tpu.dot_dimension_numbers<[2], [1], [1], [2], [0, 0, 0, 1, 1, 2], [0], [0]>} : vector<2x1x16xf32>, vector<2x16x128xf32>, vector<2x1x128xf32> -> vector<2x1x128xf32>
    "tpu.trace_stop"() : () -> ()
    %39 = vector.shape_cast %38 : vector<2x1x128xf32> to vector<2x128xf32>
    %c0_20 = arith.constant 0 : index
    %c0_21 = arith.constant 0 : index
    %40 = vector.load %arg8[%c0_20, %c0_21] : memref<2x16xf32, #tpu.memory_space<vmem>>, vector<2x16xf32>
    tpu.vector_store %arg8[%c0_20, %c0_21], %36 {strides = array<i32>} : memref<2x16xf32, #tpu.memory_space<vmem>>, vector<2x16xf32>,
    %c0_22 = arith.constant 0 : index
    %c0_23 = arith.constant 0 : index
    %41 = vector.load %arg9[%c0_22, %c0_23] : memref<2x128xf32, #tpu.memory_space<vmem>>, vector<2x128xf32>
    tpu.vector_store %arg9[%c0_22, %c0_23], %39 {strides = array<i32>} : memref<2x128xf32, #tpu.memory_space<vmem>>, vector<2x128xf32>,
    return
  }
  func.func @transform_0(%arg0: i32) -> (i32, i32) {
    %c0_i32 = arith.constant 0 : i32
    %c0_i32_0 = arith.constant 0 : i32
    return %arg0, %c0_i32 : i32, i32
  }
  func.func @transform_1(%arg0: i32) -> (i32, i32, i32) {
    %c0_i32 = arith.constant 0 : i32
    %c0_i32_0 = arith.constant 0 : i32
    %c0_i32_1 = arith.constant 0 : i32
    return %arg0, %c0_i32, %c0_i32_0 : i32, i32, i32
  }
  func.func @transform_2(%arg0: i32) -> (i32, i32) {
    %c0_i32 = arith.constant 0 : i32
    %c0_i32_0 = arith.constant 0 : i32
    %c0_i32_1 = arith.constant 0 : i32
    return %c0_i32, %c0_i32_0 : i32, i32
  }
  func.func @transform_3(%arg0: i32) -> (i32, i32) {
    %c0_i32 = arith.constant 0 : i32
    %c0_i32_0 = arith.constant 0 : i32
    %c0_i32_1 = arith.constant 0 : i32
    return %c0_i32, %c0_i32_0 : i32, i32
  }
  func.func @transform_4(%arg0: i32) -> (i32, i32) {
    %c0_i32 = arith.constant 0 : i32
    %c0_i32_0 = arith.constant 0 : i32
    %c0_i32_1 = arith.constant 0 : i32
    return %c0_i32, %c0_i32_0 : i32, i32
  }
  func.func @transform_5(%arg0: i32) -> (i32, i32) {
    %c0_i32 = arith.constant 0 : i32
    %c0_i32_0 = arith.constant 0 : i32
    %c0_i32_1 = arith.constant 0 : i32
    return %c0_i32, %c0_i32_0 : i32, i32
  }
  func.func @transform_6(%arg0: i32) -> (i32, i32) {
    %c0_i32 = arith.constant 0 : i32
    %c0_i32_0 = arith.constant 0 : i32
    %c0_i32_1 = arith.constant 0 : i32
    return %c0_i32, %c0_i32_0 : i32, i32
  }
  func.func @transform_7(%arg0: i32) -> (i32, i32) {
    %c0_i32 = arith.constant 0 : i32
    %c0_i32_0 = arith.constant 0 : i32
    return %arg0, %c0_i32 : i32, i32
  }
  func.func @transform_8(%arg0: i32) -> (i32, i32) {
    %c0_i32 = arith.constant 0 : i32
    %c0_i32_0 = arith.constant 0 : i32
    return %arg0, %c0_i32 : i32, i32
  }
}

</mosaic_0001>

<llo_original>
// kernel: tpu_custom_call.1
$region0: #{tpu_custom_call.1}
  #allocation0 [shape = 'u32[]', space=smem, size = 0x4, offset = 0x4, fixed_abs, tag = 'smem constant byte address 0x4 - core index']
  #allocation1 [shape = 'u32[72,128]{1,0:T(1,128)}', space=vmem, size = 0x9000, scoped, tag = 'internal scratch']
  %s0 = inlined_call_operand.vmem [shape: s32[2,1], index: 0, kind: input, shape index: {}]
  %s1 = inlined_call_operand.hbm [shape: f32[2,16,32], index: 1, kind: input, shape index: {}]
  %s2 = inlined_call_operand.hbm [shape: f32[32,256], index: 2, kind: input, shape index: {}]
  %s3 = inlined_call_operand.vmem [shape: f32[1,256], index: 3, kind: input, shape index: {}]
  %s4 = inlined_call_operand.hbm [shape: f32[256,128], index: 4, kind: input, shape index: {}]
  %s5 = inlined_call_operand.vmem [shape: f32[1,128], index: 5, kind: input, shape index: {}]
  %s6 = inlined_call_operand.vmem [shape: f32[1,128], index: 6, kind: input, shape index: {}]
  %s7 = inlined_call_operand.hbm [shape: f32[2,16], index: 7, kind: output, shape index: {0}]
  %s8 = inlined_call_operand.hbm [shape: f32[2,128], index: 8, kind: output, shape index: {1}]
  %9 = xla_tuple %s7, %s8
  %s10 = sld [smem:[#allocation0]]
  $region58: #{tpu_custom_call.1} parent=0
    _
  %s12 = ssub.s32 1, %s10
  %s13 = scalar_select 0, %s12, %s10
  $region1: #{tpu_custom_call.1} parent=0
    #allocation2 [shape = 'u8[16384]{0}', space=vmem, size = 0x4000, scoped, tag = 'input window, operand 1, single buffered']
    #allocation3 [shape = 's32[1]{0}', space=sflag, size = 0x4, scoped, tag = 'scoped memory for tpu_custom_call.1']
    #allocation4 [shape = 's32[1]{0}', space=sflag, size = 0x4, scoped, tag = 'scoped memory for tpu_custom_call.1']
    #allocation5 [shape = 'u8[32768]{0}', space=vmem, size = 0x8000, scoped, tag = 'input window, operand 2, single buffered']
    #allocation6 [shape = 's32[1]{0}', space=sflag, size = 0x4, scoped, tag = 'scoped memory for tpu_custom_call.1']
    #allocation7 [shape = 'u8[131072]{0}', space=vmem, size = 0x20000, scoped, tag = 'input window, operand 4, single buffered']
    #allocation8 [shape = 'u8[1024]{0}', space=vmem, size = 0x400, scoped, tag = 'output window, operand 0, single buffered']
    #allocation9 [shape = 'u8[1024]{0}', space=vmem, size = 0x400, scoped, tag = 'output window, operand 1, single buffered']
    #allocation10 [shape = 's32[1]{0}', space=sflag, size = 0x4, scoped, tag = 'scoped memory for tpu_custom_call.1']
    %14 = vsyncpa [#allocation3], 0
    %15 = vsyncpa [#allocation6], 0
    %16 = vsyncpa [#allocation4], 0
    %17 = vsyncpa [#allocation10], 0
    // Predicated region
    $region2: #{tpu_custom_call.1} parent=1 // pred_check
      _
    $region3: #{tpu_custom_call.1} parent=1 // pred_check_branch
      %19 = sbr.rel (0) target = $region5
    $region4: #{tpu_custom_call.1} parent=1 // pred_region
      _
    $region5: #{tpu_custom_call.1} parent=1 // pred_fallthru
      _
    // Predicated region
    $region6: #{tpu_custom_call.1} parent=1 // pred_check
      _
    $region7: #{tpu_custom_call.1} parent=1 // pred_check_branch
      %21 = sbr.rel (0) target = $region9
    $region8: #{tpu_custom_call.1} parent=1 // pred_region
      %23 = vsyncadd [#allocation3], 0
      %s24 = sshll.u32 %s1, 4
      %s25 = int_to_ptr.hbm [resolvable:$true] %s24
      %s26 = sshll.u32 [#allocation2], 4
      %s27 = int_to_ptr.vmem [resolvable:$true] %s26
      %32 = dma.hbm_to_vmem [thread:$0]  %s25, 512, %s27, [#allocation3], 128, 128, 8
    $region9: #{tpu_custom_call.1} parent=1 // pred_fallthru
      _
    // Predicated region
    $region10: #{tpu_custom_call.1} parent=1 // pred_check
      _
    $region11: #{tpu_custom_call.1} parent=1 // pred_check_branch
      %34 = sbr.rel (0) target = $region13
    $region12: #{tpu_custom_call.1} parent=1 // pred_region
      %36 = vsyncadd [#allocation6], 0
      %s37 = sshll.u32 %s2, 4
      %s38 = int_to_ptr.hbm [resolvable:$true] %s37
      %s39 = sshll.u32 [#allocation5], 4
      %s40 = int_to_ptr.vmem [resolvable:$true] %s39
      %45 = dma.hbm_to_vmem [thread:$0]  %s38, 1024, %s40, [#allocation6], 256, 256, 16
    $region13: #{tpu_custom_call.1} parent=1 // pred_fallthru
      _
    // Predicated region
    $region14: #{tpu_custom_call.1} parent=1 // pred_check
      _
    $region15: #{tpu_custom_call.1} parent=1 // pred_check_branch
      %47 = sbr.rel (0) target = $region17
    $region16: #{tpu_custom_call.1} parent=1 // pred_region
      _
    $region17: #{tpu_custom_call.1} parent=1 // pred_fallthru
      _
    // Predicated region
    $region18: #{tpu_custom_call.1} parent=1 // pred_check
      _
    $region19: #{tpu_custom_call.1} parent=1 // pred_check_branch
      %49 = sbr.rel (0) target = $region21
    $region20: #{tpu_custom_call.1} parent=1 // pred_region
      %51 = vsyncadd [#allocation6], 0
      %s52 = sshll.u32 %s4, 4
      %s53 = int_to_ptr.hbm [resolvable:$true] %s52
      %s54 = sshll.u32 [#allocation7], 4
      %s55 = int_to_ptr.vmem [resolvable:$true] %s54
      %60 = dma.hbm_to_vmem [thread:$0]  %s53, 4096, %s55, [#allocation6], 128, 128, 8
    $region21: #{tpu_custom_call.1} parent=1 // pred_fallthru
      _
    // Predicated region
    $region22: #{tpu_custom_call.1} parent=1 // pred_check
      _
    $region23: #{tpu_custom_call.1} parent=1 // pred_check_branch
      %62 = sbr.rel (0) target = $region25
    $region24: #{tpu_custom_call.1} parent=1 // pred_region
      _
    $region25: #{tpu_custom_call.1} parent=1 // pred_fallthru
      _
    // Predicated region
    $region26: #{tpu_custom_call.1} parent=1 // pred_check
      _
    $region27: #{tpu_custom_call.1} parent=1 // pred_check_branch
      %64 = sbr.rel (0) target = $region29
    $region28: #{tpu_custom_call.1} parent=1 // pred_region
      _
    $region29: #{tpu_custom_call.1} parent=1 // pred_fallthru
      _
    // Predicated region
    $region30: #{tpu_custom_call.1} parent=1 // pred_check
      _
    $region31: #{tpu_custom_call.1} parent=1 // pred_check_branch
      %66 = sbr.rel (0) target = $region33
    $region32: #{tpu_custom_call.1} parent=1 // pred_region
      %68 = dma.done [#allocation3], 512
    $region33: #{tpu_custom_call.1} parent=1 // pred_fallthru
      _
    // Predicated region
    $region34: #{tpu_custom_call.1} parent=1 // pred_check
      _
    $region35: #{tpu_custom_call.1} parent=1 // pred_check_branch
      %70 = sbr.rel (0) target = $region37
    $region36: #{tpu_custom_call.1} parent=1 // pred_region
      %72 = dma.done [#allocation6], 1024
    $region37: #{tpu_custom_call.1} parent=1 // pred_fallthru
      _
    // Predicated region
    $region38: #{tpu_custom_call.1} parent=1 // pred_check
      _
    $region39: #{tpu_custom_call.1} parent=1 // pred_check_branch
      %74 = sbr.rel (0) target = $region41
    $region40: #{tpu_custom_call.1} parent=1 // pred_region
      %76 = dma.done [#allocation6], 4096
    $region41: #{tpu_custom_call.1} parent=1 // pred_fallthru
      _
    %v77 = vld [vmem:[#allocation2] sm:$0xff]
    %v78 = vld [vmem:[#allocation2 + $0x8] sm:$0xff]
    %v79 = vld [vmem:[#allocation2 + $0x10] sm:$0xff]
    %v80 = vld [vmem:[#allocation2 + $0x18] sm:$0xff]
    %v81 = vld [vmem:[#allocation5] sm:$0xff]
    %v82 = vld [vmem:[#allocation5 + $0x8] sm:$0xff]
    %v83 = vld [vmem:[#allocation5 + $0x10] sm:$0xff]
    %v84 = vld [vmem:[#allocation5 + $0x18] sm:$0xff]
    %v85 = vld [vmem:[#allocation5 + $0x20] sm:$0xff]
    %v86 = vld [vmem:[#allocation5 + $0x28] sm:$0xff]
    %v87 = vld [vmem:[#allocation5 + $0x30] sm:$0xff]
    %v88 = vld [vmem:[#allocation5 + $0x38] sm:$0xff]
    %v89 = vld [vmem:[%s3] sm:$0x3]
    %v91 = vperm.slane %v89, 0
    %v92 = vperm.slane %v89, 1
    %vm95 = vcmask 261120
    %v97 = vsel %vm95, %v77, 0
    %v100 = vsel %vm95, %v78, 0
    %v103 = vsel %vm95, %v79, 0
    %v106 = vsel %vm95, %v80, 0
    %108 = vmatpush.msra.mxu0 0.0
    %109 = vmatpush.msra.mxu0 0.0
    %110 = vmatpush.msra.mxu0 0.0
    %111 = vmatpush.msra.mxu0 0.0
    %112 = vmatpush.msra.mxu0 0.0
    %113 = vmatpush.msra.mxu0 0.0
    %114 = vmatpush.msra.mxu0 0.0
    %115 = vmatpush.msra.mxu0 0.0
    %116 = vmatpush.msra.mxu0 0.0
    %117 = vmatpush.msra.mxu0 0.0
    %118 = vmatpush.msra.mxu0 0.0
    %119 = vmatpush.msra.mxu0 0.0
    %120 = vmatpush.msra.mxu0 %v87
    %121 = vmatpush.msra.mxu0 %v85
    %122 = vmatpush.msra.mxu0 %v83
    %123 = vmatpush.msra.mxu0 %v81
    %124 = vmatmul.f32.gmra.mxu0 %v97
    %v125 = vpop.f32.mrf.mxu0
    %v126 = vadd.f32 %v91, %v125
    %127 = vmatmul.f32.gmra.mxu0 %v100
    %v128 = vpop.f32.mrf.mxu0
    %v129 = vadd.f32 %v91, %v128
    %130 = vmatmul.f32.gmra.mxu0 %v103
    %v131 = vpop.f32.mrf.mxu0
    %v132 = vadd.f32 %v91, %v131
    %133 = vmatmul.f32.gmra.mxu0 %v106
    %v134 = vpop.f32.mrf.mxu0
    %v135 = vadd.f32 %v91, %v134
    %136 = vdwg.mxu0
    %137 = vmatpush.msra.mxu0 0.0
    %138 = vmatpush.msra.mxu0 0.0
    %139 = vmatpush.msra.mxu0 0.0
    %140 = vmatpush.msra.mxu0 0.0
    %141 = vmatpush.msra.mxu0 0.0
    %142 = vmatpush.msra.mxu0 0.0
    %143 = vmatpush.msra.mxu0 0.0
    %144 = vmatpush.msra.mxu0 0.0
    %145 = vmatpush.msra.mxu0 0.0
    %146 = vmatpush.msra.mxu0 0.0
    %147 = vmatpush.msra.mxu0 0.0
    %148 = vmatpush.msra.mxu0 0.0
    %149 = vmatpush.msra.mxu0 %v88
    %150 = vmatpush.msra.mxu0 %v86
    %151 = vmatpush.msra.mxu0 %v84
    %152 = vmatpush.msra.mxu0 %v82
    %153 = vmatmul.f32.gmra.mxu0 %v97
    %v154 = vpop.f32.mrf.mxu0
    %v155 = vadd.f32 %v92, %v154
    %156 = vmatmul.f32.gmra.mxu0 %v100
    %v157 = vpop.f32.mrf.mxu0
    %v158 = vadd.f32 %v92, %v157
    %159 = vmatmul.f32.gmra.mxu0 %v103
    %v160 = vpop.f32.mrf.mxu0
    %v161 = vadd.f32 %v92, %v160
    %162 = vmatmul.f32.gmra.mxu0 %v106
    %v163 = vpop.f32.mrf.mxu0
    %v164 = vadd.f32 %v92, %v163
    %165 = vdwg.mxu0
    %v166 = vmax.f32 %v126, 0.0
    %v167 = vmax.f32 %v155, 0.0
    %v168 = vmax.f32 %v129, 0.0
    %v169 = vmax.f32 %v158, 0.0
    %v170 = vmax.f32 %v132, 0.0
    %v171 = vmax.f32 %v161, 0.0
    %v172 = vmax.f32 %v135, 0.0
    %v173 = vmax.f32 %v164, 0.0
    %v174 = vld [vmem:[#allocation7] sm:$0xff]
    %v175 = vld [vmem:[#allocation7 + $0x8] sm:$0xff]
    %v176 = vld [vmem:[#allocation7 + $0x10] sm:$0xff]
    %v177 = vld [vmem:[#allocation7 + $0x18] sm:$0xff]
    %v178 = vld [vmem:[#allocation7 + $0x20] sm:$0xff]
    %v179 = vld [vmem:[#allocation7 + $0x28] sm:$0xff]
    %v180 = vld [vmem:[#allocation7 + $0x30] sm:$0xff]
    %v181 = vld [vmem:[#allocation7 + $0x38] sm:$0xff]
    %v182 = vld [vmem:[#allocation7 + $0x40] sm:$0xff]
    %v183 = vld [vmem:[#allocation7 + $0x48] sm:$0xff]
    %v184 = vld [vmem:[#allocation7 + $0x50] sm:$0xff]
    %v185 = vld [vmem:[#allocation7 + $0x58] sm:$0xff]
    %v186 = vld [vmem:[#allocation7 + $0x60] sm:$0xff]
    %v187 = vld [vmem:[#allocation7 + $0x68] sm:$0xff]
    %v188 = vld [vmem:[#allocation7 + $0x70] sm:$0xff]
    %v189 = vld [vmem:[#allocation7 + $0x78] sm:$0xff]
    %v190 = vld [vmem:[#allocation7 + $0x80] sm:$0xff]
    %v191 = vld [vmem:[#allocation7 + $0x88] sm:$0xff]
    %v192 = vld [vmem:[#allocation7 + $0x90] sm:$0xff]
    %v193 = vld [vmem:[#allocation7 + $0x98] sm:$0xff]
    %v194 = vld [vmem:[#allocation7 + $0xa0] sm:$0xff]
    %v195 = vld [vmem:[#allocation7 + $0xa8] sm:$0xff]
    %v196 = vld [vmem:[#allocation7 + $0xb0] sm:$0xff]
    %v197 = vld [vmem:[#allocation7 + $0xb8] sm:$0xff]
    %v198 = vld [vmem:[#allocation7 + $0xc0] sm:$0xff]
    %v199 = vld [vmem:[#allocation7 + $0xc8] sm:$0xff]
    %v200 = vld [vmem:[#allocation7 + $0xd0] sm:$0xff]
    %v201 = vld [vmem:[#allocation7 + $0xd8] sm:$0xff]
    %v202 = vld [vmem:[#allocation7 + $0xe0] sm:$0xff]
    %v203 = vld [vmem:[#allocation7 + $0xe8] sm:$0xff]
    %v204 = vld [vmem:[#allocation7 + $0xf0] sm:$0xff]
    %v205 = vld [vmem:[#allocation7 + $0xf8] sm:$0xff]
    %v206 = vld [vmem:[%s5] sm:$0x1]
    %v208 = vperm.slane %v206, 0
    %210 = vmatpush.msra.mxu0 %v189
    %211 = vmatpush.msra.mxu0 %v188
    %212 = vmatpush.msra.mxu0 %v187
    %213 = vmatpush.msra.mxu0 %v186
    %214 = vmatpush.msra.mxu0 %v185
    %215 = vmatpush.msra.mxu0 %v184
    %216 = vmatpush.msra.mxu0 %v183
    %217 = vmatpush.msra.mxu0 %v182
    %218 = vmatpush.msra.mxu0 %v181
    %219 = vmatpush.msra.mxu0 %v180
    %220 = vmatpush.msra.mxu0 %v179
    %221 = vmatpush.msra.mxu0 %v178
    %222 = vmatpush.msra.mxu0 %v177
    %223 = vmatpush.msra.mxu0 %v176
    %224 = vmatpush.msra.mxu0 %v175
    %225 = vmatpush.msra.mxu0 %v174
    %226 = vmatmul.f32.gmra.mxu0 %v166
    %v227 = vpop.f32.mrf.mxu0
    %v228 = vadd.f32 %v208, %v227
    %229 = vmatmul.f32.gmra.mxu0 %v168
    %v230 = vpop.f32.mrf.mxu0
    %v231 = vadd.f32 %v208, %v230
    %232 = vmatmul.f32.gmra.mxu0 %v170
    %v233 = vpop.f32.mrf.mxu0
    %v234 = vadd.f32 %v208, %v233
    %235 = vmatmul.f32.gmra.mxu0 %v172
    %v236 = vpop.f32.mrf.mxu0
    %v237 = vadd.f32 %v208, %v236
    %238 = vdwg.mxu0
    %239 = vmatpush.msra.mxu0 %v205
    %240 = vmatpush.msra.mxu0 %v204
    %241 = vmatpush.msra.mxu0 %v203
    %242 = vmatpush.msra.mxu0 %v202
    %243 = vmatpush.msra.mxu0 %v201
    %244 = vmatpush.msra.mxu0 %v200
    %245 = vmatpush.msra.mxu0 %v199
    %246 = vmatpush.msra.mxu0 %v198
    %247 = vmatpush.msra.mxu0 %v197
    %248 = vmatpush.msra.mxu0 %v196
    %249 = vmatpush.msra.mxu0 %v195
    %250 = vmatpush.msra.mxu0 %v194
    %251 = vmatpush.msra.mxu0 %v193
    %252 = vmatpush.msra.mxu0 %v192
    %253 = vmatpush.msra.mxu0 %v191
    %254 = vmatpush.msra.mxu0 %v190
    %255 = vmatmul.f32.gmra.mxu0 %v167
    %v256 = vpop.f32.mrf.mxu0
    %v257 = vadd.f32 %v228, %v256
    %258 = vmatmul.f32.gmra.mxu0 %v169
    %v259 = vpop.f32.mrf.mxu0
    %v260 = vadd.f32 %v231, %v259
    %261 = vmatmul.f32.gmra.mxu0 %v171
    %v262 = vpop.f32.mrf.mxu0
    %v263 = vadd.f32 %v234, %v262
    %264 = vmatmul.f32.gmra.mxu0 %v173
    %v265 = vpop.f32.mrf.mxu0
    %v266 = vadd.f32 %v237, %v265
    %267 = vdwg.mxu0
    %v268 = vtanh.pop %v257
    %v269 = vtanh.pop %v260
    %v270 = vtanh.pop %v263
    %v271 = vtanh.pop %v266
    %v272 = vld [vmem:[%s6] sm:$0x1]
    %v274 = vperm.slane %v272, 0
    %v276 = vmul.f32 %v268, %v274
    %v277 = vmul.f32 %v269, %v274
    %v278 = vmul.f32 %v270, %v274
    %v279 = vmul.f32 %v271, %v274
    %280 = vadd.xlane.f32.xlu0 %v276
    %v281 = vpop.xlane.xlu0 %280
    %282 = vadd.xlane.f32.xlu0 %v277
    %v283 = vpop.xlane.xlu0 %282
    %284 = vadd.xlane.f32.xlu0 %v278
    %v285 = vpop.xlane.xlu0 %284
    %286 = vadd.xlane.f32.xlu0 %v279
    %v287 = vpop.xlane.xlu0 %286
    %v288 = vlaneseq
    %v289 = vand.u32 %v288, 127
    %v294 = vperm.slane %v281, %v289
    %v295 = vadd.s32 %v289, 4294967288
    %v296 = vperm.slane %v283, %v295
    %vm297 = vcmask 130112
    %v298 = vsel %vm297, %v296, %v294
    %v299 = vperm.slane %v285, %v289
    %v300 = vperm.slane %v287, %v295
    %v301 = vsel %vm297, %v300, %v299
    %vm302 = vcmask 1041409
    %v303 = vsel %vm302, %v301, %v298
    %vm305 = vcmask 123904
    %v306 = vsel %vm305, %v303, -inf
    %307 = vmax.xlane.f32.xlu0 %v306
    %v308 = vpop.xlane.xlu0 %307
    %v310 = vperm.slane %v308, 0
    %v311 = vperm.slane %v308, 1
    %v314 = vsub.f32 %v281, %v310
    %v315 = vsub.f32 %v283, %v310
    %v316 = vsub.f32 %v285, %v311
    %v317 = vsub.f32 %v287, %v311
    %v318 = vmul.f32 %v314, 1.442695
    %v319 = vpow.pop %v318
    %v320 = vmul.f32 %v315, 1.442695
    %v321 = vpow.pop %v320
    %v322 = vmul.f32 %v316, 1.442695
    %v323 = vpow.pop %v322
    %v324 = vmul.f32 %v317, 1.442695
    %v325 = vpow.pop %v324
    %330 = vset.pattern.permute.xlu0 0
    %331 = vperm.xlu0 %330, %v319
    %v332 = vpop.permute.xlu0 %331
    %333 = vset.pattern.permute.xlu0 0
    %334 = vperm.xlu0 %333, %v321
    %v335 = vpop.permute.xlu0 %334
    %336 = vset.pattern.permute.xlu0 0
    %337 = vperm.xlu0 %336, %v323
    %v338 = vpop.permute.xlu0 %337
    %339 = vset.pattern.permute.xlu0 0
    %340 = vperm.xlu0 %339, %v325
    %v341 = vpop.permute.xlu0 %340
    %v342 = vperm.slane %v332, %v289
    %v343 = vperm.slane %v335, %v295
    %v344 = vsel %vm297, %v343, %v342
    %v345 = vperm.slane %v338, %v289
    %v346 = vperm.slane %v341, %v295
    %v347 = vsel %vm297, %v346, %v345
    %v348 = vsel %vm302, %v347, %v344
    %v350 = vsel %vm305, %v348, 0.0
    %351 = vadd.xlane.f32.xlu0 %v350
    %v352 = vpop.xlane.xlu0 %351
    %v354 = vperm.slane %v352, 0
    %v355 = vperm.slane %v352, 1
    %v358 = vrcp.pop %v354
    %v359 = vmul.f32 %v354, %v358
    %v360 = vsub.f32 1.0, %v359
    %v361 = vmul.f32 %v358, %v360
    %v362 = vadd.f32 %v358, %v361
    %vm363 = vweird.f32 %v354
    %vm364 = vweird.f32 %v358
    %vm365 = vmor %vm363, %vm364
    %v366 = vsel %vm365, %v358, %v362
    %v367 = vand.u32 2147483647, %v354
    %vm368 = vcmp.eq.f32.partialorder %v367, 8.507059e+37
    %v369 = vand.u32 %v354, 2147483648
    %v370 = vor.u32 1.1754944e-38, %v369
    %v371 = vsel %vm368, %v370, %v366
    %v372 = vmul.f32 %v319, %v371
    %v373 = vmul.f32 %v321, %v371
    %v374 = vrcp.pop %v355
    %v375 = vmul.f32 %v355, %v374
    %v376 = vsub.f32 1.0, %v375
    %v377 = vmul.f32 %v374, %v376
    %v378 = vadd.f32 %v374, %v377
    %vm379 = vweird.f32 %v355
    %vm380 = vweird.f32 %v374
    %vm381 = vmor %vm379, %vm380
    %v382 = vsel %vm381, %v374, %v378
    %v383 = vand.u32 2147483647, %v355
    %vm384 = vcmp.eq.f32.partialorder %v383, 8.507059e+37
    %v385 = vand.u32 %v355, 2147483648
    %v386 = vor.u32 1.1754944e-38, %v385
    %v387 = vsel %vm384, %v386, %v382
    %v388 = vmul.f32 %v323, %v387
    %v389 = vmul.f32 %v325, %v387
    %v390 = vld [vmem:[%s0] sm:$0x3]
    %391 = vset.pattern.permute.xlu0 0
    %392 = vperm.xlu0 %391, %v390
    %v393 = vpop.permute.xlu0 %392
    %vm394 = vcmp.lt.s32.totalorder %v289, %v393
    %v395 = vsel %vm394, 1, 0
    %v396 = vcvt.s32.f32 %v395
    %v398 = vperm.slane %v396, 0
    %v399 = vlaneseq
    %v400 = vshrl.u32 %v399, 7
    %402 = vset.pattern.permute.xlu0 %v400
    %403 = vperm.xlu0 %402, %v398
    %v404 = vpop.permute.xlu0 %403
    %v405 = vlaneseq
    %v406 = vshrl.u32 %v405, 7
    %v407 = vadd.s32 %v406, 8
    %408 = vset.pattern.permute.xlu0 %v407
    %409 = vperm.xlu0 %408, %v398
    %v410 = vpop.permute.xlu0 %409
    %v411 = vperm.slane %v396, 1
    %v412 = vlaneseq
    %v413 = vshrl.u32 %v412, 7
    %415 = vset.pattern.permute.xlu0 %v413
    %416 = vperm.xlu0 %415, %v411
    %v417 = vpop.permute.xlu0 %416
    %v418 = vlaneseq
    %v419 = vshrl.u32 %v418, 7
    %v420 = vadd.s32 %v419, 8
    %421 = vset.pattern.permute.xlu0 %v420
    %422 = vperm.xlu0 %421, %v411
    %v423 = vpop.permute.xlu0 %422
    %v428 = vmul.f32 %v372, %v404
    %v429 = vmul.f32 %v373, %v410
    %v430 = vmul.f32 %v388, %v417
    %v431 = vmul.f32 %v389, %v423
    %434 = vset.pattern.permute.xlu0 0
    %435 = vperm.xlu0 %434, %v428
    %v436 = vpop.permute.xlu0 %435
    %437 = vset.pattern.permute.xlu0 0
    %438 = vperm.xlu0 %437, %v429
    %v439 = vpop.permute.xlu0 %438
    %v440 = vperm.slane %v436, %v289
    %v441 = vperm.slane %v439, %v295
    %v442 = vsel %vm297, %v441, %v440
    %vm443 = vcmask 130048
    %v444 = vsel %vm443, %v442, 0
    %446 = vmatpush.msra.mxu0 0.0
    %447 = vmatpush.msra.mxu0 0.0
    %448 = vmatpush.msra.mxu0 0.0
    %449 = vmatpush.msra.mxu0 0.0
    %450 = vmatpush.msra.mxu0 0.0
    %451 = vmatpush.msra.mxu0 0.0
    %452 = vmatpush.msra.mxu0 0.0
    %453 = vmatpush.msra.mxu0 0.0
    %454 = vmatpush.msra.mxu0 0.0
    %455 = vmatpush.msra.mxu0 0.0
    %456 = vmatpush.msra.mxu0 0.0
    %457 = vmatpush.msra.mxu0 0.0
    %458 = vmatpush.msra.mxu0 0.0
    %459 = vmatpush.msra.mxu0 0.0
    %460 = vmatpush.msra.mxu0 %v269
    %461 = vmatpush.msra.mxu0 %v268
    %462 = vmatmul.f32.gmra.mxu0 %v444
    %v463 = vpop.f32.mrf.mxu0
    %v464 = vadd.f32 0.0, %v463
    %465 = vdwg.mxu0
    %468 = vset.pattern.permute.xlu0 0
    %469 = vperm.xlu0 %468, %v430
    %v470 = vpop.permute.xlu0 %469
    %471 = vset.pattern.permute.xlu0 0
    %472 = vperm.xlu0 %471, %v431
    %v473 = vpop.permute.xlu0 %472
    %v474 = vperm.slane %v470, %v289
    %v475 = vperm.slane %v473, %v295
    %v476 = vsel %vm297, %v475, %v474
    %v477 = vsel %vm443, %v476, 0
    %479 = vmatpush.msra.mxu0 0.0
    %480 = vmatpush.msra.mxu0 0.0
    %481 = vmatpush.msra.mxu0 0.0
    %482 = vmatpush.msra.mxu0 0.0
    %483 = vmatpush.msra.mxu0 0.0
    %484 = vmatpush.msra.mxu0 0.0
    %485 = vmatpush.msra.mxu0 0.0
    %486 = vmatpush.msra.mxu0 0.0
    %487 = vmatpush.msra.mxu0 0.0
    %488 = vmatpush.msra.mxu0 0.0
    %489 = vmatpush.msra.mxu0 0.0
    %490 = vmatpush.msra.mxu0 0.0
    %491 = vmatpush.msra.mxu0 0.0
    %492 = vmatpush.msra.mxu0 0.0
    %493 = vmatpush.msra.mxu0 %v271
    %494 = vmatpush.msra.mxu0 %v270
    %495 = vmatmul.f32.gmra.mxu0 %v477
    %v496 = vpop.f32.mrf.mxu0
    %v497 = vadd.f32 0.0, %v496
    %498 = vdwg.mxu0
    %v499 = vsel %vm302, %v476, %v442
    %501 = vst.msk [vmem:[#allocation8] sm:$0x3] %vm305, %v499
    %v504 = vrot.slane %v497, 7
    %v505 = vsel %vm302, %v504, %v464
    %507 = vst [vmem:[#allocation9] sm:$0x3] %v505
    // Predicated region
    $region42: #{tpu_custom_call.1} parent=1 // pred_check
      _
    $region43: #{tpu_custom_call.1} parent=1 // pred_check_branch
      %509 = sbr.rel (0) target = $region45
    $region44: #{tpu_custom_call.1} parent=1 // pred_region
      %511 = vsyncadd [#allocation4], 0
      %s513 = sshll.u32 [#allocation8], 4
      %s514 = int_to_ptr.vmem [resolvable:$true] %s513
      %s515 = sshll.u32 %s7, 4
      %s516 = int_to_ptr.hbm [resolvable:$true] %s515
      %518 = dma.vmem_to_hbm [thread:$0]  %s514, 32, %s516, [#allocation4]
    $region45: #{tpu_custom_call.1} parent=1 // pred_fallthru
      _
    // Predicated region
    $region46: #{tpu_custom_call.1} parent=1 // pred_check
      _
    $region47: #{tpu_custom_call.1} parent=1 // pred_check_branch
      %520 = sbr.rel (0) target = $region49
    $region48: #{tpu_custom_call.1} parent=1 // pred_region
      %522 = vsyncadd [#allocation10], 0
      %s524 = sshll.u32 [#allocation9], 4
      %s525 = int_to_ptr.vmem [resolvable:$true] %s524
      %s526 = sshll.u32 %s8, 4
      %s527 = int_to_ptr.hbm [resolvable:$true] %s526
      %529 = dma.vmem_to_hbm [thread:$0]  %s525, 32, %s527, [#allocation10]
    $region49: #{tpu_custom_call.1} parent=1 // pred_fallthru
      _
    // Predicated region
    $region50: #{tpu_custom_call.1} parent=1 // pred_check
      _
    $region51: #{tpu_custom_call.1} parent=1 // pred_check_branch
      %531 = sbr.rel (0) target = $region53
    $region52: #{tpu_custom_call.1} parent=1 // pred_region
      %533 = dma.done [#allocation4], 32
    $region53: #{tpu_custom_call.1} parent=1 // pred_fallthru
      _
    // Predicated region
    $region54: #{tpu_custom_call.1} parent=1 // pred_check
      _
    $region55: #{tpu_custom_call.1} parent=1 // pred_check_branch
      %535 = sbr.rel (0) target = $region57
    $region56: #{tpu_custom_call.1} parent=1 // pred_region
      %537 = dma.done [#allocation10], 32
    $region57: #{tpu_custom_call.1} parent=1 // pred_fallthru
      _
    %538 = vsyncpa [#allocation3], 1
    %539 = vsyncpa [#allocation6], 1
    %540 = vsyncpa [#allocation4], 1
    %541 = vsyncpa [#allocation10], 1

</llo_original>
